<compile_context>
chip_gen: v7x
topology: tpu7x:2x2x1
jax: 0.10.0
libtpu: 0.0.40
codegen_flags: <defaults>
</compile_context>

<pallas_src>
import jax
import jax.numpy as jnp
from jax.experimental import pallas as pl
from jax.experimental.pallas import tpu as pltpu


def _round_up(x, m):
    return ((x + m - 1) // m) * m


# ---------------------------------------------------------------------------
# Kernels
# ---------------------------------------------------------------------------

def _fwd_kernel(x_ref, w1t_ref, w2t_ref, out_ref):
    """out = (x @ W1^T) @ W2^T; weights resident in VMEM, h1 never leaves the chip."""
    x = x_ref[...].astype(w1t_ref.dtype)
    h1 = jnp.dot(x, w1t_ref[...], preferred_element_type=jnp.float32)
    out_ref[...] = jnp.dot(h1.astype(w2t_ref.dtype), w2t_ref[...],
                           preferred_element_type=jnp.float32).astype(out_ref.dtype)


def _fwd_kernel_hidden(x_ref, w1t_ref, w2t_ref, out_ref, h1_ref):
    x = x_ref[...].astype(w1t_ref.dtype)
    h1 = jnp.dot(x, w1t_ref[...], preferred_element_type=jnp.float32)
    h1_ref[...] = h1.astype(h1_ref.dtype)
    out_ref[...] = jnp.dot(h1.astype(w2t_ref.dtype), w2t_ref[...],
                           preferred_element_type=jnp.float32).astype(out_ref.dtype)


def _fwd_kernel_tiled(x_ref, w1t_ref, w2t_ref, out_ref, acc_ref):
    """Weight-tiled path: grid=(b, n, k); accumulate fc2 over the d_hidden (k) axis."""
    k = pl.program_id(2)

    @pl.when(k == 0)
    def _init():
        acc_ref[...] = jnp.zeros_like(acc_ref)

    x = x_ref[...].astype(w1t_ref.dtype)
    h1 = jnp.dot(x, w1t_ref[...], preferred_element_type=jnp.float32)
    acc_ref[...] += jnp.dot(h1.astype(w2t_ref.dtype), w2t_ref[...],
                            preferred_element_type=jnp.float32)

    @pl.when(k == pl.num_programs(2) - 1)
    def _done():
        out_ref[...] = acc_ref[...].astype(out_ref.dtype)


def _fwd_kernel_tiled_hidden(x_ref, w1t_ref, w2t_ref, out_ref, h1_ref, acc_ref):
    # h1 block depends only on (b, k); it is rewritten (identically) for each n step,
    # which only costs anything when d_output spans more than one n tile (rare).
    k = pl.program_id(2)

    @pl.when(k == 0)
    def _init():
        acc_ref[...] = jnp.zeros_like(acc_ref)

    x = x_ref[...].astype(w1t_ref.dtype)
    h1 = jnp.dot(x, w1t_ref[...], preferred_element_type=jnp.float32)
    h1_ref[...] = h1.astype(h1_ref.dtype)
    acc_ref[...] += jnp.dot(h1.astype(w2t_ref.dtype), w2t_ref[...],
                            preferred_element_type=jnp.float32)

    @pl.when(k == pl.num_programs(2) - 1)
    def _done():
        out_ref[...] = acc_ref[...].astype(out_ref.dtype)


# ---------------------------------------------------------------------------
# Parameter preparation / hardware-aware tiling
# ---------------------------------------------------------------------------

def prepare_params(w1, w2, dtype=jnp.bfloat16, pad_d_output=None):
    """Transpose + pad + cast the PyTorch-layout weights ONCE (not per forward call).

    w1: (d_hidden, d_input), w2: (d_output, d_hidden)  [nn.Linear layout]
    Returns (w1t_p, w2t_p, d_hidden, d_output) with
      w1t_p: (d_input, d_hidden_pad128), w2t_p: (d_hidden_pad128, d_output_maybe_pad).
    d_hidden is always padded to a multiple of 128 (lane-dense fc1 output / fc2
    contraction); zero padding keeps the math exact. d_output is only padded when it is
    not tiny: for a tiny head (e.g. d_output=1) the masked store is cheaper than 128x
    output HBM writeback plus a wrapper slice.
    """
    d_hidden, d_input = w1.shape
    d_output, d_hidden2 = w2.shape
    assert d_hidden2 == d_hidden
    d_hp = _round_up(d_hidden, 128)
    if pad_d_output is None:
        pad_d_output = (d_output % 128 != 0) and (d_output > 16)
    d_op = _round_up(d_output, 128) if pad_d_output else d_output
    w1t_p = jnp.zeros((d_input, d_hp), dtype).at[:, :d_hidden].set(w1.T.astype(dtype))
    w2t_p = jnp.zeros((d_hp, d_op), dtype).at[:d_hidden, :d_output].set(w2.T.astype(dtype))
    return w1t_p, w2t_p, d_hidden, d_output


def _tpu_info():
    """(vmem_capacity_bytes, multi_tensorcore) with conservative fallbacks."""
    vmem_cap = 128 * 1024 * 1024
    multi_core = False
    try:
        info = pltpu.get_tpu_info()
        vmem_cap = int(getattr(info, "vmem_capacity_bytes", vmem_cap))
        for attr in ("num_cores", "num_tensorcores", "tensorcores_per_chip", "core_count"):
            val = getattr(info, attr, None)
            if val:
                multi_core = int(val) >= 2
                break
    except Exception:
        pass
    # v7x signature: 64 MiB VMEM per TensorCore, 2 TensorCores per chip.
    if vmem_cap <= (80 << 20):
        multi_core = True
    return vmem_cap, multi_core


def _choose_tm(B, d_input, d_hp, d_op, hidden, x_bytes, w_bytes, budget, multi_core):
    """Batch tile for the resident-weights path, or None if weights don't fit VMEM."""
    min_tm = 16 if x_bytes == 2 else 8
    b_pad = _round_up(max(B, 1), min_tm)
    weight_bytes = (d_input * d_hp + d_hp * d_op) * w_bytes      # Buffered(1): one copy
    per_row = (2 * d_input * x_bytes                             # streamed x (2 bufs)
               + 2 * d_op * x_bytes                              # streamed out (2 bufs)
               + d_hp * 4                                        # h1 intermediate (f32)
               + (2 * d_hp * x_bytes if hidden else 0))          # h1 HBM writeback tile
    avail = budget - weight_bytes
    if avail < min_tm * per_row:
        return None                                              # -> weight-tiled path
    tm = min(b_pad, 1024, max(avail // per_row, min_tm) // min_tm * min_tm)
    if multi_core and b_pad >= 2 * min_tm:
        # v7x: keep >= 2 grid steps so the "parallel" axis feeds both TensorCores.
        tm = min(tm, _round_up(-(-B // 2), min_tm))
    if tm < b_pad and tm > 128:
        tm = tm // 128 * 128                                     # MXU-friendly tiles
    return max(tm, min_tm)


def _choose_weight_tiles(B, d_input, d_hp, d_op, hidden, x_bytes, w_bytes, budget,
                         multi_core):
    """(tm, tk, tn) for the weight-tiled (K-reduction) path; tk|d_hp and tn|d_op."""
    min_tm = 16 if x_bytes == 2 else 8
    b_pad = _round_up(max(B, 1), min_tm)

    def residency(tm, tk, tn):
        r = (2 * tm * d_input * x_bytes      # streamed x tile
             + 2 * d_input * tk * w_bytes    # streamed W1^T tile
             + 2 * tk * tn * w_bytes         # streamed W2^T tile
             + 2 * tm * tn * x_bytes         # streamed out tile
             + tm * tn * 4                   # f32 accumulator scratch
             + tm * tk * 4)                  # h1 intermediate (f32)
        if hidden:
            r += 2 * tm * tk * x_bytes       # h1 HBM writeback tile
        return r

    def _divisor_cands(total, cands):
        return [c for c in cands if c < total and total % c == 0] + [total]

    tk_cands = _divisor_cands(d_hp, (1024, 512, 256, 128))
    tn_cands = _divisor_cands(d_op, (512, 256, 128)) if d_op >= 128 else [d_op]
    tm_max = b_pad
    if multi_core and b_pad >= 2 * min_tm:
        tm_max = min(tm_max, _round_up(-(-B // 2), min_tm))
    tm_cands = [t for t in (1024, 512, 256, 128, 64, 32, 16, 8)
                if t <= tm_max and t >= min_tm] or [tm_max]

    best, best_vol = None, -1
    for tm in tm_cands:
        for tk in tk_cands:
            for tn in tn_cands:
                if residency(tm, tk, tn) <= budget:
                    vol = tm * tk * tn
                    if vol > best_vol:
                        best, best_vol = (tm, tk, tn), vol
    if best is None:
        best = (min(tm_cands), min(tk_cands), min(tn_cands))
    return best


def _spec(block_shape, index_map, buffers=None):
    """BlockSpec with an optional pipeline buffer count (graceful fallback)."""
    if buffers is None:
        return pl.BlockSpec(block_shape, index_map)
    try:
        return pl.BlockSpec(block_shape, index_map, pipeline_mode=pl.Buffered(buffers))
    except (TypeError, AttributeError):
        return pl.BlockSpec(block_shape, index_map)


# ---------------------------------------------------------------------------
# Forward wrapper
# ---------------------------------------------------------------------------

def linearnet2l_forward(x, w1t_p, w2t_p, d_hidden, d_output, hidden_layer=False,
                        tm=None, weight_tiles=None, x_buffering=None):
    """x: (B, d_input); w1t_p/w2t_p prepared once via prepare_params().

    Returns `out` or `(out, [h1])` like LinearNet2L.forward.
    `weight_tiles=(tk, tn)` forces the weight-tiled (K-reduction) path.
    """
    B, d_input = x.shape
    d_hp = w1t_p.shape[1]
    d_op = w2t_p.shape[1]
    x_bytes = jnp.dtype(x.dtype).itemsize
    w_bytes = jnp.dtype(w1t_p.dtype).itemsize
    min_tm = 16 if x_bytes == 2 else 8

    vmem_cap, multi_core = _tpu_info()
    vmem_limit = max(min(int(vmem_cap * 0.85), vmem_cap - (8 << 20)), 16 << 20)
    budget = vmem_limit - (2 << 20)

    use_tiled = weight_tiles is not None
    if not use_tiled:
        if tm is None:
            tm = _choose_tm(B, d_input, d_hp, d_op, hidden_layer, x_bytes, w_bytes,
                            budget, multi_core)
        if tm is None:
            use_tiled = True
    if use_tiled and weight_tiles is None:
        tm_t, tk, tn = _choose_weight_tiles(B, d_input, d_hp, d_op, hidden_layer,
                                            x_bytes, w_bytes, budget, multi_core)
        if tm is None:
            tm = tm_t
        weight_tiles = (tk, tn)
    tm = _round_up(int(tm), min_tm)

    flops = 2 * B * d_input * d_hp + 2 * B * d_hp * d_op
    bytes_accessed = (B * d_input * x_bytes
                      + (d_input * d_hp + d_hp * d_op) * w_bytes
                      + B * d_op * x_bytes
                      + (B * d_hp * x_bytes if hidden_layer else 0))
    cost = pl.CostEstimate(flops=flops, transcendentals=0, bytes_accessed=bytes_accessed)
    out_dtype = x.dtype

    if not use_tiled:
        # Resident-weights path: weights fetched once (Buffered(1)), x/out streamed.
        # TODO(synk): if profiling shows exposed per-step DMA (small d_hidden,
        # mem-bound), pass x_buffering=3 to deepen the x pipeline.
        grid = (pl.cdiv(B, tm),)
        in_specs = [
            _spec((tm, d_input), lambda i: (i, 0), buffers=x_buffering),
            _spec((d_input, d_hp), lambda i: (0, 0), buffers=1),
            _spec((d_hp, d_op), lambda i: (0, 0), buffers=1),
        ]
        cparams = pltpu.CompilerParams(dimension_semantics=("parallel",),
                                       vmem_limit_bytes=vmem_limit)
        if hidden_layer:
            out_p, h1_p = pl.pallas_call(
                _fwd_kernel_hidden,
                out_shape=(jax.ShapeDtypeStruct((B, d_op), out_dtype),
                           jax.ShapeDtypeStruct((B, d_hp), out_dtype)),
                grid=grid, in_specs=in_specs,
                out_specs=(pl.BlockSpec((tm, d_op), lambda i: (i, 0)),
                           pl.BlockSpec((tm, d_hp), lambda i: (i, 0))),
                compiler_params=cparams, cost_estimate=cost,
            )(x, w1t_p, w2t_p)
        else:
            out_p = pl.pallas_call(
                _fwd_kernel,
                out_shape=jax.ShapeDtypeStruct((B, d_op), out_dtype),
                grid=grid, in_specs=in_specs,
                out_specs=pl.BlockSpec((tm, d_op), lambda i: (i, 0)),
                compiler_params=cparams, cost_estimate=cost,
            )(x, w1t_p, w2t_p)
            h1_p = None
    else:
        tk, tn = weight_tiles
        if d_hp % tk != 0 or d_op % tn != 0:
            raise ValueError("weight_tiles must evenly divide the padded weight dims")
        grid = (pl.cdiv(B, tm), d_op // tn, d_hp // tk)
        in_specs = [
            pl.BlockSpec((tm, d_input), lambda i, j, k: (i, 0)),
            pl.BlockSpec((d_input, tk), lambda i, j, k: (0, k)),
            pl.BlockSpec((tk, tn), lambda i, j, k: (k, j)),
        ]
        cparams = pltpu.CompilerParams(
            dimension_semantics=("parallel", "parallel", "arbitrary"),
            vmem_limit_bytes=vmem_limit)
        scratch = [pltpu.VMEM((tm, tn), jnp.float32)]
        if hidden_layer:
            out_p, h1_p = pl.pallas_call(
                _fwd_kernel_tiled_hidden,
                out_shape=(jax.ShapeDtypeStruct((B, d_op), out_dtype),
                           jax.ShapeDtypeStruct((B, d_hp), out_dtype)),
                grid=grid, in_specs=in_specs,
                out_specs=(pl.BlockSpec((tm, tn), lambda i, j, k: (i, j)),
                           pl.BlockSpec((tm, tk), lambda i, j, k: (i, k))),
                scratch_shapes=scratch,
                compiler_params=cparams, cost_estimate=cost,
            )(x, w1t_p, w2t_p)
        else:
            out_p = pl.pallas_call(
                _fwd_kernel_tiled,
                out_shape=jax.ShapeDtypeStruct((B, d_op), out_dtype),
                grid=grid, in_specs=in_specs,
                out_specs=pl.BlockSpec((tm, tn), lambda i, j, k: (i, j)),
                scratch_shapes=scratch,
                compiler_params=cparams, cost_estimate=cost,
            )(x, w1t_p, w2t_p)
            h1_p = None

    out = out_p if d_op == d_output else out_p[:, :d_output]
    if hidden_layer:
        h1 = h1_p if d_hp == d_hidden else h1_p[:, :d_hidden]
        return out, [h1]
    return out


# ---------------------------------------------------------------------------
# Init + reference (match Net.init_weights distribution; torch RNG not reproduced)
# ---------------------------------------------------------------------------

def init_weights(key, d_input, d_hidden, d_output, scaling="sqrt"):
    if scaling == "lin":
        scaling_f = lambda f_in: 1.0 / f_in
    elif scaling == "sqrt":
        scaling_f = lambda f_in: 1.0 / jnp.sqrt(f_in)
    elif scaling == "const":
        scaling_f = lambda f_in: 0.001
    else:
        raise ValueError(f"Invalid scaling option '{scaling}'")
    k1, k2 = jax.random.split(key)
    # PyTorch nn.Linear weight layout: (out_features, in_features)
    w1 = jax.random.normal(k1, (d_hidden, d_input), jnp.float32) * scaling_f(1.0 * d_input)
    w2 = jax.random.normal(k2, (d_output, d_hidden), jnp.float32) * scaling_f(1.0 * d_hidden)
    return w1, w2


def reference_forward(x, w1, w2, dtype):
    """Pure-JAX reference matching the kernel's compute dtype."""
    f32 = jnp.float32
    hp = jax.lax.Precision.HIGHEST
    xd = x.astype(dtype).astype(f32)
    w1d = w1.astype(dtype).astype(f32)
    w2d = w2.astype(dtype).astype(f32)
    h1 = jnp.dot(xd, w1d.T, precision=hp)
    out = jnp.dot(h1.astype(dtype).astype(f32), w2d.T, precision=hp)
    return out, h1


if __name__ == "__main__":
    key = jax.random.PRNGKey(0)
    kx, kw, kx2, kw2 = jax.random.split(key, 4)

    batch, d_input, d_hidden, d_output = 8, 32, 64, 1
    x = jax.random.normal(kx, (batch, d_input), jnp.float32)
    w1, w2 = init_weights(kw, d_input, d_hidden, d_output, scaling="sqrt")

    # Default (bf16 weight) path -- precision change vs fp32 module is intentional.
    w1t_p, w2t_p, dh, do = prepare_params(w1, w2)
    ref_out, ref_h1 = reference_forward(x, w1, w2, jnp.bfloat16)

    # hidden_layer=True path (h1 written out)
    out, (h1,) = linearnet2l_forward(x, w1t_p, w2t_p, dh, do, hidden_layer=True)
    out = jax.block_until_ready(out)
    h1 = jax.block_until_ready(h1)
    assert out.shape == (batch, d_output)
    assert h1.shape == (batch, d_hidden)
    assert jnp.allclose(out, ref_out, atol=1e-2, rtol=1e-2)
    assert jnp.allclose(h1, ref_h1, atol=1e-2, rtol=1e-2)

    # hidden_layer=False fast path (no h1 HBM writeback)
    out2 = jax.block_until_ready(linearnet2l_forward(x, w1t_p, w2t_p, dh, do))
    assert out2.shape == (batch, d_output)
    assert jnp.allclose(out2, ref_out, atol=1e-2, rtol=1e-2)

    # multi-tile batch path (grid > 1)
    x_big = jax.random.normal(kx2, (24, d_input), jnp.float32)
    ref_big, _ = reference_forward(x_big, w1, w2, jnp.bfloat16)
    out3 = jax.block_until_ready(
        linearnet2l_forward(x_big, w1t_p, w2t_p, dh, do, tm=8))
    assert out3.shape == (24, d_output)
    assert jnp.allclose(out3, ref_big, atol=1e-2, rtol=1e-2)

    # weight-tiled (K-reduction) path: larger d_hidden, forced small weight tiles.
    d_hidden_big = 384
    w1b, w2b = init_weights(kw2, d_input, d_hidden_big, d_output, scaling="sqrt")
    w1t_b, w2t_b, dhb, dob = prepare_params(w1b, w2b)
    ref_b_out, ref_b_h1 = reference_forward(x_big, w1b, w2b, jnp.bfloat16)
    out4, (h1_4,) = linearnet2l_forward(x_big, w1t_b, w2t_b, dhb, dob,
                                        hidden_layer=True, tm=8,
                                        weight_tiles=(128, w2t_b.shape[1]))
    out4 = jax.block_until_ready(out4)
    h1_4 = jax.block_until_ready(h1_4)
    assert out4.shape == (24, d_output)
    assert h1_4.shape == (24, d_hidden_big)
    assert jnp.allclose(out4, ref_b_out, atol=1e-2, rtol=1e-2)
    assert jnp.allclose(h1_4, ref_b_h1, atol=1e-2, rtol=1e-2)

    print("KERNEL_OK")
</pallas_src>

<mosaic_0001>
module attributes {stable_mosaic.version = 11 : i64} {
  func.func @_fwd_kernel_hidden(%arg0: i32, %arg1: memref<8x32xf32, #tpu.memory_space<vmem>>, %arg2: memref<32x128xbf16, #tpu.memory_space<vmem>>, %arg3: memref<128x1xbf16, #tpu.memory_space<vmem>>, %arg4: memref<8x1xf32, #tpu.memory_space<vmem>>, %arg5: memref<8x128xf32, #tpu.memory_space<vmem>>) attributes {dimension_semantics = [#tpu.dimension_semantics<parallel>], iteration_bounds = array<i64: 1>, scalar_prefetch = 0 : i64, scratch_operands = 0 : i64, tpu.core_type = #tpu.core_type<tc>, window_params = [{transform_indices = @transform_0, window_bounds = array<i64: 8, 32>}, {pipeline_mode = #tpu.pipeline_mode<synchronous>, transform_indices = @transform_1, window_bounds = array<i64: 32, 128>}, {pipeline_mode = #tpu.pipeline_mode<synchronous>, transform_indices = @transform_2, window_bounds = array<i64: 128, 1>}, {transform_indices = @transform_3, window_bounds = array<i64: 8, 1>}, {transform_indices = @transform_4, window_bounds = array<i64: 8, 128>}]} {
    %c0 = arith.constant 0 : index
    %c0_0 = arith.constant 0 : index
    %0 = vector.load %arg1[%c0, %c0_0] : memref<8x32xf32, #tpu.memory_space<vmem>>, vector<8x32xf32>
    %1 = arith.truncf %0 : vector<8x32xf32> to vector<8x32xbf16>
    %c0_1 = arith.constant 0 : index
    %c0_2 = arith.constant 0 : index
    %2 = vector.load %arg2[%c0_1, %c0_2] : memref<32x128xbf16, #tpu.memory_space<vmem>>, vector<32x128xbf16>
    %cst = arith.constant dense<0.000000e+00> : vector<8x128xf32>
    %3 = tpu.matmul %1, %2, %cst {dimension_numbers = #tpu.dot_dimension_numbers<[1], [0], [0], [1], [0, 0, 1, 1], [], []>} : vector<8x32xbf16>, vector<32x128xbf16>, vector<8x128xf32> -> vector<8x128xf32>
    %c0_3 = arith.constant 0 : index
    %c0_4 = arith.constant 0 : index
    %4 = vector.load %arg5[%c0_3, %c0_4] : memref<8x128xf32, #tpu.memory_space<vmem>>, vector<8x128xf32>
    tpu.vector_store %arg5[%c0_3, %c0_4], %3 {strides = array<i32>} : memref<8x128xf32, #tpu.memory_space<vmem>>, vector<8x128xf32>,
    %5 = arith.truncf %3 : vector<8x128xf32> to vector<8x128xbf16>
    %c0_5 = arith.constant 0 : index
    %c0_6 = arith.constant 0 : index
    %6 = vector.load %arg3[%c0_5, %c0_6] : memref<128x1xbf16, #tpu.memory_space<vmem>>, vector<128x1xbf16>
    %cst_7 = arith.constant dense<0.000000e+00> : vector<8x1xf32>
    %7 = tpu.matmul %5, %6, %cst_7 {dimension_numbers = #tpu.dot_dimension_numbers<[1], [0], [0], [1], [0, 0, 1, 1], [], []>} : vector<8x128xbf16>, vector<128x1xbf16>, vector<8x1xf32> -> vector<8x1xf32>
    %c0_8 = arith.constant 0 : index
    %c0_9 = arith.constant 0 : index
    %8 = vector.load %arg4[%c0_8, %c0_9] : memref<8x1xf32, #tpu.memory_space<vmem>>, vector<8x1xf32>
    tpu.vector_store %arg4[%c0_8, %c0_9], %7 {strides = array<i32>} : memref<8x1xf32, #tpu.memory_space<vmem>>, vector<8x1xf32>,
    return
  }
  func.func @transform_0(%arg0: i32) -> (i32, i32) {
    %c0_i32 = arith.constant 0 : i32
    %c0_i32_0 = arith.constant 0 : i32
    return %arg0, %c0_i32 : i32, i32
  }
  func.func @transform_1(%arg0: i32) -> (i32, i32) {
    %c0_i32 = arith.constant 0 : i32
    %c0_i32_0 = arith.constant 0 : i32
    %c0_i32_1 = arith.constant 0 : i32
    return %c0_i32, %c0_i32_0 : i32, i32
  }
  func.func @transform_2(%arg0: i32) -> (i32, i32) {
    %c0_i32 = arith.constant 0 : i32
    %c0_i32_0 = arith.constant 0 : i32
    %c0_i32_1 = arith.constant 0 : i32
    return %c0_i32, %c0_i32_0 : i32, i32
  }
  func.func @transform_3(%arg0: i32) -> (i32, i32) {
    %c0_i32 = arith.constant 0 : i32
    %c0_i32_0 = arith.constant 0 : i32
    return %arg0, %c0_i32 : i32, i32
  }
  func.func @transform_4(%arg0: i32) -> (i32, i32) {
    %c0_i32 = arith.constant 0 : i32
    %c0_i32_0 = arith.constant 0 : i32
    return %arg0, %c0_i32 : i32, i32
  }
}

</mosaic_0001>

<llo_original>
// kernel: tpu_custom_call.1
$region0: #{tpu_custom_call.1}
  #allocation0 [shape = 'u32[]', space=smem, size = 0x4, offset = 0x4, fixed_abs, tag = 'smem constant byte address 0x4 - core index']
  #allocation1 [shape = 'u32[144,128]{1,0:T(1,128)}', space=vmem, size = 0x12000, scoped, tag = 'internal scratch']
  %s0 = inlined_call_operand.hbm [shape: f32[8,32], index: 0, kind: input, shape index: {}]
  %s1 = inlined_call_operand.hbm [shape: bf16[32,128], index: 1, kind: input, shape index: {}]
  %s2 = inlined_call_operand.hbm [shape: bf16[128,1], index: 2, kind: input, shape index: {}]
  %s3 = inlined_call_operand.hbm [shape: f32[8,1], index: 3, kind: output, shape index: {0}]
  %s4 = inlined_call_operand.hbm [shape: f32[8,128], index: 4, kind: output, shape index: {1}]
  %5 = xla_tuple %s3, %s4
  %s6 = sld [smem:[#allocation0]]
  $region42: #{tpu_custom_call.1} parent=0
    _
  %s8 = ssub.s32 1, %s6
  %s9 = scalar_select 0, %s8, %s6
  $region1: #{tpu_custom_call.1} parent=0
    #allocation2 [shape = 'u8[4096]{0}', space=vmem, size = 0x1000, scoped, tag = 'input window, operand 0, single buffered']
    #allocation3 [shape = 's32[1]{0}', space=sflag, size = 0x4, scoped, tag = 'scoped memory for tpu_custom_call.1']
    #allocation4 [shape = 's32[1]{0}', space=sflag, size = 0x4, scoped, tag = 'scoped memory for tpu_custom_call.1']
    #allocation5 [shape = 'u8[8192]{0}', space=vmem, size = 0x2000, scoped, tag = 'input window, operand 1, single buffered']
    #allocation6 [shape = 's32[1]{0}', space=sflag, size = 0x4, scoped, tag = 'scoped memory for tpu_custom_call.1']
    #allocation7 [shape = 'u8[32768]{0}', space=vmem, size = 0x8000, scoped, tag = 'input window, operand 2, single buffered']
    #allocation8 [shape = 'u8[4096]{0}', space=vmem, size = 0x1000, scoped, tag = 'output window, operand 0, single buffered']
    #allocation9 [shape = 'u8[4096]{0}', space=vmem, size = 0x1000, scoped, tag = 'output window, operand 1, single buffered']
    #allocation10 [shape = 's32[1]{0}', space=sflag, size = 0x4, scoped, tag = 'scoped memory for tpu_custom_call.1']
    %10 = vsyncpa [#allocation3], 0
    %11 = vsyncpa [#allocation6], 0
    %12 = vsyncpa [#allocation4], 0
    %13 = vsyncpa [#allocation10], 0
    // Predicated region
    $region2: #{tpu_custom_call.1} parent=1 // pred_check
      _
    $region3: #{tpu_custom_call.1} parent=1 // pred_check_branch
      %15 = sbr.rel (0) target = $region5
    $region4: #{tpu_custom_call.1} parent=1 // pred_region
      %s17 = ssub.s32 128, 128
      %18 = vsyncadd [#allocation3], %s17
      %s20 = sshll.u32 [#allocation2], 4
      %s21 = int_to_ptr.vmem [resolvable:$true] %s20
      %23 = dma.hbm_to_vmem [thread:$0]  %s0, 128, %s21, [#allocation3]
    $region5: #{tpu_custom_call.1} parent=1 // pred_fallthru
      _
    // Predicated region
    $region6: #{tpu_custom_call.1} parent=1 // pred_check
      _
    $region7: #{tpu_custom_call.1} parent=1 // pred_check_branch
      %25 = sbr.rel (0) target = $region9
    $region8: #{tpu_custom_call.1} parent=1 // pred_region
      %s27 = ssub.s32 256, 256
      %28 = vsyncadd [#allocation6], %s27
      %s29 = sshll.u32 [#allocation5], 4
      %s30 = int_to_ptr.vmem [resolvable:$true] %s29
      %35 = dma.hbm_to_vmem [thread:$0]  %s1, 256, %s30, [#allocation6], 64, 64, 4
    $region9: #{tpu_custom_call.1} parent=1 // pred_fallthru
      _
    // Predicated region
    $region10: #{tpu_custom_call.1} parent=1 // pred_check
      _
    $region11: #{tpu_custom_call.1} parent=1 // pred_check_branch
      %37 = sbr.rel (0) target = $region13
    $region12: #{tpu_custom_call.1} parent=1 // pred_region
      %s39 = ssub.s32 1024, 1024
      %40 = vsyncadd [#allocation6], %s39
      %s41 = sshll.u32 [#allocation7], 4
      %s42 = int_to_ptr.vmem [resolvable:$true] %s41
      %47 = dma.hbm_to_vmem [thread:$0]  %s2, 1024, %s42, [#allocation6], 64, 64, 4
    $region13: #{tpu_custom_call.1} parent=1 // pred_fallthru
      _
    // Predicated region
    $region14: #{tpu_custom_call.1} parent=1 // pred_check
      _
    $region15: #{tpu_custom_call.1} parent=1 // pred_check_branch
      %49 = sbr.rel (0) target = $region17
    $region16: #{tpu_custom_call.1} parent=1 // pred_region
      %50 = dma.done [#allocation3], 128
    $region17: #{tpu_custom_call.1} parent=1 // pred_fallthru
      _
    // Predicated region
    $region18: #{tpu_custom_call.1} parent=1 // pred_check
      _
    $region19: #{tpu_custom_call.1} parent=1 // pred_check_branch
      %52 = sbr.rel (0) target = $region21
    $region20: #{tpu_custom_call.1} parent=1 // pred_region
      %53 = dma.done [#allocation6], 256
    $region21: #{tpu_custom_call.1} parent=1 // pred_fallthru
      _
    // Predicated region
    $region22: #{tpu_custom_call.1} parent=1 // pred_check
      _
    $region23: #{tpu_custom_call.1} parent=1 // pred_check_branch
      %55 = sbr.rel (0) target = $region25
    $region24: #{tpu_custom_call.1} parent=1 // pred_region
      %56 = dma.done [#allocation6], 1024
    $region25: #{tpu_custom_call.1} parent=1 // pred_fallthru
      _
    %v58 = vld [vmem:[#allocation2] sm:$0xff]
    %v59 = vpack.c.bf16 %v58, %v58
    %v60 = vld [vmem:[#allocation5] sm:$0xf]
    %v61 = vld [vmem:[#allocation5 + $0x4] sm:$0xf]
    %v62 = vld [vmem:[#allocation5 + $0x8] sm:$0xf]
    %v63 = vld [vmem:[#allocation5 + $0xc] sm:$0xf]
    %v68 = vunpack.c.l.b16 %v60
    %v69 = vunpack.c.l.b16 %v61
    %v70 = vunpack.c.l.b16 %v62
    %v71 = vunpack.c.l.b16 %v63
    %v72 = vpack.c.b16 %v69, %v68
    %v73 = vpack.c.b16 %v71, %v70
    %vm76 = vcmask 261120
    %v78 = vsel %vm76, %v59, 0
    %80 = vmatprep.subr.bf16.mxu0 0
    %81 = vmatpush1.bf16.msra.mxu0 %v72
    %82 = vmatprep.subr.bf16.mxu0 0
    %83 = vmatpush1.bf16.msra.mxu0 %v73
    %84 = vmatprep.subr.bf16.mxu0 0
    %85 = vmatpush1.bf16.msra.mxu0 0
    %86 = vmatprep.subr.bf16.mxu0 0
    %87 = vmatpush1.bf16.msra.mxu0 0
    %88 = vmatprep.subr.bf16.mxu0 0
    %89 = vmatpush1.bf16.msra.mxu0 0
    %90 = vmatprep.subr.bf16.mxu0 0
    %91 = vmatpush1.bf16.msra.mxu0 0
    %92 = vmatprep.subr.bf16.mxu0 0
    %93 = vmatpush1.bf16.msra.mxu0 0
    %94 = vmatprep.subr.bf16.mxu0 0
    %95 = vmatpush1.bf16.msra.mxu0 0
    %96 = vmatprep.subr.bf16.mxu0 0
    %97 = vmatpush1.bf16.msra.mxu0 0
    %98 = vmatprep.subr.bf16.mxu0 0
    %99 = vmatpush1.bf16.msra.mxu0 0
    %100 = vmatprep.subr.bf16.mxu0 0
    %101 = vmatpush1.bf16.msra.mxu0 0
    %102 = vmatprep.subr.bf16.mxu0 0
    %103 = vmatpush1.bf16.msra.mxu0 0
    %104 = vmatprep.subr.bf16.mxu0 0
    %105 = vmatpush1.bf16.msra.mxu0 0
    %106 = vmatprep.subr.bf16.mxu0 0
    %107 = vmatpush1.bf16.msra.mxu0 0
    %108 = vmatprep.subr.bf16.mxu0 0
    %109 = vmatpush1.bf16.msra.mxu0 0
    %110 = vmatprep.subr.bf16.mxu0 0
    %111 = vmatpush1.bf16.msra.mxu0 0
    %112 = vmatprep.mubr.bf16.mxu0 0
    %113 = vmatmul.mubr.bf16.gmra.mrb[0].mxu0 %v78
    %v114 = vpop.f32.mrb[0].mxu0
    %v115 = vadd.f32 0.0, %v114
    %v116 = vpop.f32.mrb[0].mxu0
    %v117 = vpop.f32.mrb[0].mxu0
    %v118 = vpop.f32.mrb[0].mxu0
    %119 = vdwg.mxu0
    %120 = vst [vmem:[#allocation9] sm:$0xff] %v115
    %v121 = vpack.c.bf16 %v115, %v115
    %v122 = vld [vmem:[#allocation7] sm:$0xf]
    %v123 = vld [vmem:[#allocation7 + $0x4] sm:$0xf]
    %v124 = vld [vmem:[#allocation7 + $0x8] sm:$0xf]
    %v125 = vld [vmem:[#allocation7 + $0xc] sm:$0xf]
    %v126 = vld [vmem:[#allocation7 + $0x10] sm:$0xf]
    %v127 = vld [vmem:[#allocation7 + $0x14] sm:$0xf]
    %v128 = vld [vmem:[#allocation7 + $0x18] sm:$0xf]
    %v129 = vld [vmem:[#allocation7 + $0x1c] sm:$0xf]
    %v130 = vld [vmem:[#allocation7 + $0x20] sm:$0xf]
    %v131 = vld [vmem:[#allocation7 + $0x24] sm:$0xf]
    %v132 = vld [vmem:[#allocation7 + $0x28] sm:$0xf]
    %v133 = vld [vmem:[#allocation7 + $0x2c] sm:$0xf]
    %v134 = vld [vmem:[#allocation7 + $0x30] sm:$0xf]
    %v135 = vld [vmem:[#allocation7 + $0x34] sm:$0xf]
    %v136 = vld [vmem:[#allocation7 + $0x38] sm:$0xf]
    %v137 = vld [vmem:[#allocation7 + $0x3c] sm:$0xf]
    %v154 = vunpack.c.l.b16 %v122
    %v155 = vunpack.c.l.b16 %v123
    %v156 = vunpack.c.l.b16 %v124
    %v157 = vunpack.c.l.b16 %v125
    %v158 = vunpack.c.l.b16 %v126
    %v159 = vunpack.c.l.b16 %v127
    %v160 = vunpack.c.l.b16 %v128
    %v161 = vunpack.c.l.b16 %v129
    %v162 = vunpack.c.l.b16 %v130
    %v163 = vunpack.c.l.b16 %v131
    %v164 = vunpack.c.l.b16 %v132
    %v165 = vunpack.c.l.b16 %v133
    %v166 = vunpack.c.l.b16 %v134
    %v167 = vunpack.c.l.b16 %v135
    %v168 = vunpack.c.l.b16 %v136
    %v169 = vunpack.c.l.b16 %v137
    %v170 = vpack.c.b16 %v155, %v154
    %v171 = vpack.c.b16 %v157, %v156
    %v172 = vpack.c.b16 %v159, %v158
    %v173 = vpack.c.b16 %v161, %v160
    %v174 = vpack.c.b16 %v163, %v162
    %v175 = vpack.c.b16 %v165, %v164
    %v176 = vpack.c.b16 %v167, %v166
    %v177 = vpack.c.b16 %v169, %v168
    %186 = vmatprep.subr.bf16.mxu0 0
    %187 = vmatpush1.bf16.msra.mxu0 %v170
    %188 = vmatprep.subr.bf16.mxu0 0
    %189 = vmatpush1.bf16.msra.mxu0 %v171
    %190 = vmatprep.subr.bf16.mxu0 0
    %191 = vmatpush1.bf16.msra.mxu0 %v172
    %192 = vmatprep.subr.bf16.mxu0 0
    %193 = vmatpush1.bf16.msra.mxu0 %v173
    %194 = vmatprep.subr.bf16.mxu0 0
    %195 = vmatpush1.bf16.msra.mxu0 %v174
    %196 = vmatprep.subr.bf16.mxu0 0
    %197 = vmatpush1.bf16.msra.mxu0 %v175
    %198 = vmatprep.subr.bf16.mxu0 0
    %199 = vmatpush1.bf16.msra.mxu0 %v176
    %200 = vmatprep.subr.bf16.mxu0 0
    %201 = vmatpush1.bf16.msra.mxu0 %v177
    %202 = vmatprep.subr.bf16.mxu0 0
    %203 = vmatpush1.bf16.msra.mxu0 0
    %204 = vmatprep.subr.bf16.mxu0 0
    %205 = vmatpush1.bf16.msra.mxu0 0
    %206 = vmatprep.subr.bf16.mxu0 0
    %207 = vmatpush1.bf16.msra.mxu0 0
    %208 = vmatprep.subr.bf16.mxu0 0
    %209 = vmatpush1.bf16.msra.mxu0 0
    %210 = vmatprep.subr.bf16.mxu0 0
    %211 = vmatpush1.bf16.msra.mxu0 0
    %212 = vmatprep.subr.bf16.mxu0 0
    %213 = vmatpush1.bf16.msra.mxu0 0
    %214 = vmatprep.subr.bf16.mxu0 0
    %215 = vmatpush1.bf16.msra.mxu0 0
    %216 = vmatprep.subr.bf16.mxu0 0
    %217 = vmatpush1.bf16.msra.mxu0 0
    %218 = vmatprep.mubr.bf16.mxu0 0
    %219 = vmatmul.mubr.bf16.gmra.mrb[0].mxu0 %v121
    %v220 = vpop.f32.mrb[0].mxu0
    %v221 = vadd.f32 0.0, %v220
    %v222 = vpop.f32.mrb[0].mxu0
    %v223 = vpop.f32.mrb[0].mxu0
    %v224 = vpop.f32.mrb[0].mxu0
    %225 = vdwg.mxu0
    %vm226 = vcmask 7168
    %227 = vst.msk [vmem:[#allocation8] sm:$0xff] %vm226, %v221
    // Predicated region
    $region26: #{tpu_custom_call.1} parent=1 // pred_check
      _
    $region27: #{tpu_custom_call.1} parent=1 // pred_check_branch
      %229 = sbr.rel (0) target = $region29
    $region28: #{tpu_custom_call.1} parent=1 // pred_region
      %s231 = ssub.s32 128, 128
      %232 = vsyncadd [#allocation4], %s231
      %s234 = sshll.u32 [#allocation8], 4
      %s235 = int_to_ptr.vmem [resolvable:$true] %s234
      %237 = dma.vmem_to_hbm [thread:$0]  %s235, 128, %s3, [#allocation4]
    $region29: #{tpu_custom_call.1} parent=1 // pred_fallthru
      _
    // Predicated region
    $region30: #{tpu_custom_call.1} parent=1 // pred_check
      _
    $region31: #{tpu_custom_call.1} parent=1 // pred_check_branch
      %239 = sbr.rel (0) target = $region33
    $region32: #{tpu_custom_call.1} parent=1 // pred_region
      %s241 = ssub.s32 128, 128
      %242 = vsyncadd [#allocation10], %s241
      %s244 = sshll.u32 [#allocation9], 4
      %s245 = int_to_ptr.vmem [resolvable:$true] %s244
      %247 = dma.vmem_to_hbm [thread:$0]  %s245, 128, %s4, [#allocation10]
    $region33: #{tpu_custom_call.1} parent=1 // pred_fallthru
      _
    // Predicated region
    $region34: #{tpu_custom_call.1} parent=1 // pred_check
      _
    $region35: #{tpu_custom_call.1} parent=1 // pred_check_branch
      %249 = sbr.rel (0) target = $region37
    $region36: #{tpu_custom_call.1} parent=1 // pred_region
      %250 = dma.done [#allocation4], 128
    $region37: #{tpu_custom_call.1} parent=1 // pred_fallthru
      _
    // Predicated region
    $region38: #{tpu_custom_call.1} parent=1 // pred_check
      _
    $region39: #{tpu_custom_call.1} parent=1 // pred_check_branch
      %252 = sbr.rel (0) target = $region41
    $region40: #{tpu_custom_call.1} parent=1 // pred_region
      %253 = dma.done [#allocation10], 128
    $region41: #{tpu_custom_call.1} parent=1 // pred_fallthru
      _
    %254 = vsyncpa [#allocation3], 1
    %255 = vsyncpa [#allocation6], 1
    %256 = vsyncpa [#allocation4], 1
    %257 = vsyncpa [#allocation10], 1

</llo_original>
